<compile_context>
chip_gen: v7x
topology: tpu7x:2x2x1
jax: 0.10.0
libtpu: 0.0.40
codegen_flags: <defaults>
</compile_context>

<pallas_src>
import math
from functools import partial

import jax
import jax.numpy as jnp
from jax.experimental import pallas as pl
from jax.experimental.pallas import tpu as pltpu


def _attention_after_kernel(q_ref, k_ref, v_ref, w_ref, b_ref, o_ref, *, scale):
    # q_ref/k_ref/v_ref: (B, H, S, Dh) activation dtype
    # w_ref:             (H, Dh, hidden_pad)  bf16   (W_out^T, padded, wrapper)
    # b_ref:             (1, 1, hidden_pad)   f32
    # o_ref:             (B, S, hidden_pad)
    B, H, S, Dh = q_ref.shape
    hidden_pad = w_ref.shape[-1]
    G = B * H

    # Fold 1/sqrt(Dh) into Q (touches (B,H,S,Dh) instead of (B,H,S,S)); merge
    # (B,H) into one leading batch axis (no lane/sublane relayout); feed the
    # MXU bf16 operands, accumulate in f32.
    q = (q_ref[...] * scale).reshape(G, S, Dh).astype(jnp.bfloat16)
    k = k_ref[...].reshape(G, S, Dh).astype(jnp.bfloat16)
    v = v_ref[...].reshape(G, S, Dh).astype(jnp.bfloat16)

    # Attention scores + numerically-stable softmax, all in f32.
    scores = jnp.einsum("gqd,gkd->gqk", q, k,
                        preferred_element_type=jnp.float32)       # (G, S, S)
    m = jnp.max(scores, axis=-1, keepdims=True)
    e = jnp.exp(scores - m)
    l = jnp.sum(e, axis=-1, keepdims=True)
    inv_l = pl.reciprocal(l, approx=True)          # EUP slot (separate unit)
    # attn_dropout: identity (eval mode)

    # Unnormalized context; fold 1/l into the much smaller (G,S,Dh) context.
    ctx = jnp.einsum("gqk,gkd->gqd", e.astype(jnp.bfloat16), v,
                     preferred_element_type=jnp.float32)          # (G, S, Dh)
    ctx = (ctx * inv_l).astype(jnp.bfloat16)

    # Output projection fused with permute(0,2,1,3)+view:
    #   out[b,s,o] = sum_{h,d} ctx[b,h,s,d] * W^T[h*Dh+d, o] + b[o]
    # expressed as one batched MXU contraction over g = b*H + h (W broadcast
    # over B inside VMEM), then a head-sum.  No zeros accumulator, no per-head
    # slices, no serial adds; bias added once.
    w_b = jnp.broadcast_to(w_ref[...][None], (B, H, Dh, hidden_pad))
    w_b = w_b.reshape(G, Dh, hidden_pad)
    part = jnp.einsum("gsd,gdo->gso", ctx, w_b,
                      preferred_element_type=jnp.float32)         # (G, S, hid_p)
    out = part.reshape(B, H, S, hidden_pad).sum(axis=1)           # (B, S, hid_p)
    out = out + b_ref[...]
    # proj_dropout: identity (eval mode)

    o_ref[...] = out.astype(o_ref.dtype)


def attention_after(query, key, value, w_out, b_out):
    """query/key/value: (B, H, S, Dh); w_out: (hidden, hidden) in PyTorch layout
    (out_features, in_features); b_out: (hidden,). Returns (B, S, hidden)."""
    B, H, S, Dh = query.shape
    hidden = H * Dh
    assert w_out.shape == (hidden, hidden)
    scale = 1.0 / math.sqrt(Dh)

    # Lane-dense output: pad the projection output features up to a multiple of
    # 128 so the kernel's stores are unmasked full-lane vst (no-op when hidden
    # is already a multiple of 128).
    hidden_pad = max(128, ((hidden + 127) // 128) * 128)

    # x @ W.T == x @ w_t with w_t = W.T (in, out); split the `in` axis into
    # (H, Dh) so head h / channel d selects row h*Dh + d — this reproduces
    # permute(0,2,1,3)+view without any in-kernel transpose.
    w_t = jnp.transpose(w_out)                                    # (hidden, hidden)
    if hidden_pad != hidden:
        w_t = jnp.pad(w_t, ((0, 0), (0, hidden_pad - hidden)))
        b_p = jnp.pad(b_out, (0, hidden_pad - hidden))
    else:
        b_p = b_out
    w3 = w_t.reshape(H, Dh, hidden_pad).astype(jnp.bfloat16)      # bf16 MXU weights
    b3 = b_p.reshape(1, 1, hidden_pad).astype(jnp.float32)

    vmem = pltpu.MemorySpace.VMEM
    out_pad = pl.pallas_call(
        partial(_attention_after_kernel, scale=scale),
        out_shape=jax.ShapeDtypeStruct((B, S, hidden_pad), query.dtype),
        in_specs=[pl.BlockSpec(memory_space=vmem)] * 5,
        out_specs=pl.BlockSpec(memory_space=vmem),
    )(query, key, value, w3, b3)
    return out_pad[:, :, :hidden]


def attention_after_ref(query, key, value, w_out, b_out):
    """Pure-JAX f32 reference matching the PyTorch forward (eval mode)."""
    B, H, S, Dh = query.shape
    scores = jnp.einsum("bhqd,bhkd->bhqk", query, key) / math.sqrt(Dh)
    probs = jax.nn.softmax(scores, axis=-1)
    ctx = jnp.einsum("bhqk,bhkd->bhqd", probs, value)
    ctx = jnp.transpose(ctx, (0, 2, 1, 3)).reshape(B, S, H * Dh)
    return ctx @ w_out.T + b_out


if __name__ == "__main__":
    # config.hidden_size = 32, config.transformer['num_heads'] = 4
    B, H, S, Dh = 2, 4, 8, 8
    hidden = H * Dh

    key0 = jax.random.PRNGKey(0)
    kq, kk, kv, kw, kb = jax.random.split(key0, 5)
    q = jax.random.normal(kq, (B, H, S, Dh), dtype=jnp.float32)
    k = jax.random.normal(kk, (B, H, S, Dh), dtype=jnp.float32)
    v = jax.random.normal(kv, (B, H, S, Dh), dtype=jnp.float32)
    # deterministic Linear(hidden, hidden) params (PyTorch layout: (out, in))
    w_out = jax.random.normal(kw, (hidden, hidden), dtype=jnp.float32) * 0.05
    b_out = jax.random.normal(kb, (hidden,), dtype=jnp.float32) * 0.05

    out = attention_after(q, k, v, w_out, b_out)
    out = jax.block_until_ready(out)

    ref = attention_after_ref(q, k, v, w_out, b_out)
    assert out.shape == (B, S, hidden)
    # bf16 MXU operands (Q/K/V, probs, ctx, W) plus the EUP approximate
    # reciprocal in the softmax denominator -> compare against the f32
    # reference at a bf16-level tolerance.
    assert jnp.allclose(out, ref, atol=5e-2, rtol=5e-2), "mismatch vs reference"

    print("KERNEL_OK")
</pallas_src>

<mosaic_0001>
module attributes {stable_mosaic.version = 11 : i64} {
  func.func @_attention_after_kernel(%arg0: memref<2x4x8x8xf32, #tpu.memory_space<vmem>>, %arg1: memref<2x4x8x8xf32, #tpu.memory_space<vmem>>, %arg2: memref<2x4x8x8xf32, #tpu.memory_space<vmem>>, %arg3: memref<4x8x128xbf16, #tpu.memory_space<vmem>>, %arg4: memref<1x1x128xf32, #tpu.memory_space<vmem>>, %arg5: memref<2x8x128xf32, #tpu.memory_space<vmem>>) attributes {dimension_semantics = [], scalar_prefetch = 0 : i64, scratch_operands = 0 : i64, tpu.core_type = #tpu.core_type<tc>} {
    %c0 = arith.constant 0 : index
    %c0_0 = arith.constant 0 : index
    %c0_1 = arith.constant 0 : index
    %c0_2 = arith.constant 0 : index
    %0 = vector.load %arg0[%c0, %c0_0, %c0_1, %c0_2] : memref<2x4x8x8xf32, #tpu.memory_space<vmem>>, vector<2x4x8x8xf32>
    %cst = arith.constant 0.353553385 : f32
    %1 = vector.broadcast %cst : f32 to vector<2x4x8x8xf32>
    %2 = arith.mulf %0, %1 : vector<2x4x8x8xf32>
    %3 = vector.shape_cast %2 : vector<2x4x8x8xf32> to vector<8x8x8xf32>
    %4 = arith.truncf %3 : vector<8x8x8xf32> to vector<8x8x8xbf16>
    %c0_3 = arith.constant 0 : index
    %c0_4 = arith.constant 0 : index
    %c0_5 = arith.constant 0 : index
    %c0_6 = arith.constant 0 : index
    %5 = vector.load %arg1[%c0_3, %c0_4, %c0_5, %c0_6] : memref<2x4x8x8xf32, #tpu.memory_space<vmem>>, vector<2x4x8x8xf32>
    %6 = vector.shape_cast %5 : vector<2x4x8x8xf32> to vector<8x8x8xf32>
    %7 = arith.truncf %6 : vector<8x8x8xf32> to vector<8x8x8xbf16>
    %c0_7 = arith.constant 0 : index
    %c0_8 = arith.constant 0 : index
    %c0_9 = arith.constant 0 : index
    %c0_10 = arith.constant 0 : index
    %8 = vector.load %arg2[%c0_7, %c0_8, %c0_9, %c0_10] : memref<2x4x8x8xf32, #tpu.memory_space<vmem>>, vector<2x4x8x8xf32>
    %9 = vector.shape_cast %8 : vector<2x4x8x8xf32> to vector<8x8x8xf32>
    %10 = arith.truncf %9 : vector<8x8x8xf32> to vector<8x8x8xbf16>
    "tpu.trace_start"() <{level = 10 : i32, message = "gqd,gkd->gqk"}> : () -> ()
    %cst_11 = arith.constant dense<0.000000e+00> : vector<8x8x8xf32>
    %11 = tpu.matmul %4, %7, %cst_11 {dimension_numbers = #tpu.dot_dimension_numbers<[2], [2], [1], [1], [0, 0, 0, 1, 1, 1], [0], [0]>} : vector<8x8x8xbf16>, vector<8x8x8xbf16>, vector<8x8x8xf32> -> vector<8x8x8xf32>
    "tpu.trace_stop"() : () -> ()
    %cst_12 = arith.constant dense<0xFF800000> : vector<8x8xf32>
    %12 = vector.multi_reduction <maximumf>, %11, %cst_12 [2] : vector<8x8x8xf32> to vector<8x8xf32>
    %13 = vector.shape_cast %12 : vector<8x8xf32> to vector<8x8x1xf32>
    %14 = vector.broadcast %13 : vector<8x8x1xf32> to vector<8x8x8xf32>
    %15 = arith.subf %11, %14 : vector<8x8x8xf32>
    %16 = math.exp %15 : vector<8x8x8xf32>
    %cst_13 = arith.constant dense<0.000000e+00> : vector<8x8xf32>
    %17 = vector.multi_reduction <add>, %16, %cst_13 [2] : vector<8x8x8xf32> to vector<8x8xf32>
    %18 = vector.shape_cast %17 : vector<8x8xf32> to vector<8x8x1xf32>
    %19 = tpu.reciprocal %18 {approx = true} : vector<8x8x1xf32> -> vector<8x8x1xf32>
    %20 = arith.truncf %16 : vector<8x8x8xf32> to vector<8x8x8xbf16>
    "tpu.trace_start"() <{level = 10 : i32, message = "gqk,gkd->gqd"}> : () -> ()
    %cst_14 = arith.constant dense<0.000000e+00> : vector<8x8x8xf32>
    %21 = tpu.matmul %20, %10, %cst_14 {dimension_numbers = #tpu.dot_dimension_numbers<[2], [1], [1], [2], [0, 0, 0, 1, 1, 2], [0], [0]>} : vector<8x8x8xbf16>, vector<8x8x8xbf16>, vector<8x8x8xf32> -> vector<8x8x8xf32>
    "tpu.trace_stop"() : () -> ()
    %22 = vector.broadcast %19 : vector<8x8x1xf32> to vector<8x8x8xf32>
    %23 = arith.mulf %21, %22 : vector<8x8x8xf32>
    %24 = arith.truncf %23 : vector<8x8x8xf32> to vector<8x8x8xbf16>
    %c0_15 = arith.constant 0 : index
    %c0_16 = arith.constant 0 : index
    %c0_17 = arith.constant 0 : index
    %25 = vector.load %arg3[%c0_15, %c0_16, %c0_17] : memref<4x8x128xbf16, #tpu.memory_space<vmem>>, vector<4x8x128xbf16>
    %26 = vector.shape_cast %25 : vector<4x8x128xbf16> to vector<1x4x8x128xbf16>
    %27 = vector.shape_cast %26 : vector<1x4x8x128xbf16> to vector<1x4x8x128xbf16>
    %28 = vector.broadcast %27 : vector<1x4x8x128xbf16> to vector<2x4x8x128xbf16>
    %29 = vector.shape_cast %28 : vector<2x4x8x128xbf16> to vector<8x8x128xbf16>
    "tpu.trace_start"() <{level = 10 : i32, message = "gsd,gdo->gso"}> : () -> ()
    %cst_18 = arith.constant dense<0.000000e+00> : vector<8x8x128xf32>
    %30 = tpu.matmul %24, %29, %cst_18 {dimension_numbers = #tpu.dot_dimension_numbers<[2], [1], [1], [2], [0, 0, 0, 1, 1, 2], [0], [0]>} : vector<8x8x8xbf16>, vector<8x8x128xbf16>, vector<8x8x128xf32> -> vector<8x8x128xf32>
    "tpu.trace_stop"() : () -> ()
    %31 = vector.shape_cast %30 : vector<8x8x128xf32> to vector<2x4x8x128xf32>
    %cst_19 = arith.constant dense<0.000000e+00> : vector<2x8x128xf32>
    %32 = vector.multi_reduction <add>, %31, %cst_19 [1] : vector<2x4x8x128xf32> to vector<2x8x128xf32>
    %c0_20 = arith.constant 0 : index
    %c0_21 = arith.constant 0 : index
    %c0_22 = arith.constant 0 : index
    %33 = vector.load %arg4[%c0_20, %c0_21, %c0_22] : memref<1x1x128xf32, #tpu.memory_space<vmem>>, vector<1x1x128xf32>
    %34 = vector.broadcast %33 : vector<1x1x128xf32> to vector<2x8x128xf32>
    %35 = arith.addf %32, %34 : vector<2x8x128xf32>
    %c0_23 = arith.constant 0 : index
    %c0_24 = arith.constant 0 : index
    %c0_25 = arith.constant 0 : index
    %36 = vector.load %arg5[%c0_23, %c0_24, %c0_25] : memref<2x8x128xf32, #tpu.memory_space<vmem>>, vector<2x8x128xf32>
    tpu.vector_store %arg5[%c0_23, %c0_24, %c0_25], %35 {strides = array<i32>} : memref<2x8x128xf32, #tpu.memory_space<vmem>>, vector<2x8x128xf32>,
    return
  }
}

</mosaic_0001>

<llo_original>
// kernel: tpu_custom_call.1
$region0: #{tpu_custom_call.1}
  #allocation0 [shape = 'u32[]', space=smem, size = 0x4, offset = 0x4, fixed_abs, tag = 'smem constant byte address 0x4 - core index']
  #allocation1 [shape = 'u32[144,128]{1,0:T(1,128)}', space=vmem, size = 0x12000, scoped, tag = 'internal scratch']
  %s0 = inlined_call_operand.hbm [shape: f32[2,4,8,8], index: 0, kind: input, shape index: {}]
  %s1 = inlined_call_operand.hbm [shape: f32[2,4,8,8], index: 1, kind: input, shape index: {}]
  %s2 = inlined_call_operand.hbm [shape: f32[2,4,8,8], index: 2, kind: input, shape index: {}]
  %s3 = inlined_call_operand.hbm [shape: bf16[4,8,128], index: 3, kind: input, shape index: {}]
  %s4 = inlined_call_operand.vmem [shape: f32[1,1,128], index: 4, kind: input, shape index: {}]
  %s5 = inlined_call_operand.hbm [shape: f32[2,8,128], index: 5, kind: output, shape index: {}]
  %s6 = sld [smem:[#allocation0]]
  $region46: #{tpu_custom_call.1} parent=0
    _
  %s8 = ssub.s32 1, %s6
  %s9 = scalar_select 0, %s8, %s6
  $region1: #{tpu_custom_call.1} parent=0
    #allocation2 [shape = 'u8[32768]{0}', space=vmem, size = 0x8000, scoped, tag = 'input window, operand 0, single buffered']
    #allocation3 [shape = 's32[1]{0}', space=sflag, size = 0x4, scoped, tag = 'scoped memory for tpu_custom_call.1']
    #allocation4 [shape = 's32[1]{0}', space=sflag, size = 0x4, scoped, tag = 'scoped memory for tpu_custom_call.1']
    #allocation5 [shape = 'u8[32768]{0}', space=vmem, size = 0x8000, scoped, tag = 'input window, operand 1, single buffered']
    #allocation6 [shape = 's32[1]{0}', space=sflag, size = 0x4, scoped, tag = 'scoped memory for tpu_custom_call.1']
    #allocation7 [shape = 'u8[32768]{0}', space=vmem, size = 0x8000, scoped, tag = 'input window, operand 2, single buffered']
    #allocation8 [shape = 'u8[8192]{0}', space=vmem, size = 0x2000, scoped, tag = 'input window, operand 3, single buffered']
    #allocation9 [shape = 's32[1]{0}', space=sflag, size = 0x4, scoped, tag = 'scoped memory for tpu_custom_call.1']
    #allocation10 [shape = 'u8[8192]{0}', space=vmem, size = 0x2000, scoped, tag = 'output window, operand 0, single buffered']
    %10 = vsyncpa [#allocation3], 0
    %11 = vsyncpa [#allocation6], 0
    %12 = vsyncpa [#allocation9], 0
    %13 = vsyncpa [#allocation4], 0
    // Predicated region
    $region2: #{tpu_custom_call.1} parent=1 // pred_check
      _
    $region3: #{tpu_custom_call.1} parent=1 // pred_check_branch
      %15 = sbr.rel (0) target = $region5
    $region4: #{tpu_custom_call.1} parent=1 // pred_region
      %s17 = ssub.s32 1024, 1024
      %18 = vsyncadd [#allocation3], %s17
      %s19 = sshll.u32 [#allocation2], 4
      %s20 = int_to_ptr.vmem [resolvable:$true] %s19
      %25 = dma.hbm_to_vmem [thread:$0]  %s0, 1024, %s20, [#allocation3], 128, 128, 8
    $region5: #{tpu_custom_call.1} parent=1 // pred_fallthru
      _
    // Predicated region
    $region6: #{tpu_custom_call.1} parent=1 // pred_check
      _
    $region7: #{tpu_custom_call.1} parent=1 // pred_check_branch
      %27 = sbr.rel (0) target = $region9
    $region8: #{tpu_custom_call.1} parent=1 // pred_region
      %s29 = ssub.s32 1024, 1024
      %30 = vsyncadd [#allocation6], %s29
      %s31 = sshll.u32 [#allocation5], 4
      %s32 = int_to_ptr.vmem [resolvable:$true] %s31
      %37 = dma.hbm_to_vmem [thread:$0]  %s1, 1024, %s32, [#allocation6], 128, 128, 8
    $region9: #{tpu_custom_call.1} parent=1 // pred_fallthru
      _
    // Predicated region
    $region10: #{tpu_custom_call.1} parent=1 // pred_check
      _
    $region11: #{tpu_custom_call.1} parent=1 // pred_check_branch
      %39 = sbr.rel (0) target = $region13
    $region12: #{tpu_custom_call.1} parent=1 // pred_region
      %s41 = ssub.s32 1024, 1024
      %42 = vsyncadd [#allocation6], %s41
      %s43 = sshll.u32 [#allocation7], 4
      %s44 = int_to_ptr.vmem [resolvable:$true] %s43
      %49 = dma.hbm_to_vmem [thread:$0]  %s2, 1024, %s44, [#allocation6], 128, 128, 8
    $region13: #{tpu_custom_call.1} parent=1 // pred_fallthru
      _
    // Predicated region
    $region14: #{tpu_custom_call.1} parent=1 // pred_check
      _
    $region15: #{tpu_custom_call.1} parent=1 // pred_check_branch
      %51 = sbr.rel (0) target = $region17
    $region16: #{tpu_custom_call.1} parent=1 // pred_region
      %s53 = ssub.s32 256, 256
      %54 = vsyncadd [#allocation9], %s53
      %s55 = sshll.u32 [#allocation8], 4
      %s56 = int_to_ptr.vmem [resolvable:$true] %s55
      %61 = dma.hbm_to_vmem [thread:$0]  %s3, 256, %s56, [#allocation9], 64, 64, 4
    $region17: #{tpu_custom_call.1} parent=1 // pred_fallthru
      _
    // Predicated region
    $region18: #{tpu_custom_call.1} parent=1 // pred_check
      _
    $region19: #{tpu_custom_call.1} parent=1 // pred_check_branch
      %63 = sbr.rel (0) target = $region21
    $region20: #{tpu_custom_call.1} parent=1 // pred_region
      _
    $region21: #{tpu_custom_call.1} parent=1 // pred_fallthru
      _
    // Predicated region
    $region22: #{tpu_custom_call.1} parent=1 // pred_check
      _
    $region23: #{tpu_custom_call.1} parent=1 // pred_check_branch
      %65 = sbr.rel (0) target = $region25
    $region24: #{tpu_custom_call.1} parent=1 // pred_region
      %66 = dma.done [#allocation3], 1024
    $region25: #{tpu_custom_call.1} parent=1 // pred_fallthru
      _
    // Predicated region
    $region26: #{tpu_custom_call.1} parent=1 // pred_check
      _
    $region27: #{tpu_custom_call.1} parent=1 // pred_check_branch
      %68 = sbr.rel (0) target = $region29
    $region28: #{tpu_custom_call.1} parent=1 // pred_region
      %69 = dma.done [#allocation6], 1024
    $region29: #{tpu_custom_call.1} parent=1 // pred_fallthru
      _
    // Predicated region
    $region30: #{tpu_custom_call.1} parent=1 // pred_check
      _
    $region31: #{tpu_custom_call.1} parent=1 // pred_check_branch
      %71 = sbr.rel (0) target = $region33
    $region32: #{tpu_custom_call.1} parent=1 // pred_region
      %72 = dma.done [#allocation6], 1024
    $region33: #{tpu_custom_call.1} parent=1 // pred_fallthru
      _
    // Predicated region
    $region34: #{tpu_custom_call.1} parent=1 // pred_check
      _
    $region35: #{tpu_custom_call.1} parent=1 // pred_check_branch
      %74 = sbr.rel (0) target = $region37
    $region36: #{tpu_custom_call.1} parent=1 // pred_region
      %75 = dma.done [#allocation9], 256
    $region37: #{tpu_custom_call.1} parent=1 // pred_fallthru
      _
    %v77 = vld [vmem:[#allocation2] sm:$0xff]
    %v78 = vld [vmem:[#allocation2 + $0x8] sm:$0xff]
    %v79 = vld [vmem:[#allocation2 + $0x10] sm:$0xff]
    %v80 = vld [vmem:[#allocation2 + $0x18] sm:$0xff]
    %v81 = vld [vmem:[#allocation2 + $0x20] sm:$0xff]
    %v82 = vld [vmem:[#allocation2 + $0x28] sm:$0xff]
    %v83 = vld [vmem:[#allocation2 + $0x30] sm:$0xff]
    %v84 = vld [vmem:[#allocation2 + $0x38] sm:$0xff]
    %v85 = vmul.f32 %v77, 0.35355338
    %v86 = vmul.f32 %v78, 0.35355338
    %v87 = vmul.f32 %v79, 0.35355338
    %v88 = vmul.f32 %v80, 0.35355338
    %v89 = vmul.f32 %v81, 0.35355338
    %v90 = vmul.f32 %v82, 0.35355338
    %v91 = vmul.f32 %v83, 0.35355338
    %v92 = vmul.f32 %v84, 0.35355338
    %v93 = vpack.c.bf16 %v85, %v85
    %v94 = vpack.c.bf16 %v86, %v86
    %v95 = vpack.c.bf16 %v87, %v87
    %v96 = vpack.c.bf16 %v88, %v88
    %v97 = vpack.c.bf16 %v89, %v89
    %v98 = vpack.c.bf16 %v90, %v90
    %v99 = vpack.c.bf16 %v91, %v91
    %v100 = vpack.c.bf16 %v92, %v92
    %v101 = vld [vmem:[#allocation5] sm:$0xff]
    %v102 = vld [vmem:[#allocation5 + $0x8] sm:$0xff]
    %v103 = vld [vmem:[#allocation5 + $0x10] sm:$0xff]
    %v104 = vld [vmem:[#allocation5 + $0x18] sm:$0xff]
    %v105 = vld [vmem:[#allocation5 + $0x20] sm:$0xff]
    %v106 = vld [vmem:[#allocation5 + $0x28] sm:$0xff]
    %v107 = vld [vmem:[#allocation5 + $0x30] sm:$0xff]
    %v108 = vld [vmem:[#allocation5 + $0x38] sm:$0xff]
    %v109 = vpack.c.bf16 %v101, %v101
    %v110 = vpack.c.bf16 %v102, %v102
    %v111 = vpack.c.bf16 %v103, %v103
    %v112 = vpack.c.bf16 %v104, %v104
    %v113 = vpack.c.bf16 %v105, %v105
    %v114 = vpack.c.bf16 %v106, %v106
    %v115 = vpack.c.bf16 %v107, %v107
    %v116 = vpack.c.bf16 %v108, %v108
    %v117 = vld [vmem:[#allocation7] sm:$0xff]
    %v118 = vld [vmem:[#allocation7 + $0x8] sm:$0xff]
    %v119 = vld [vmem:[#allocation7 + $0x10] sm:$0xff]
    %v120 = vld [vmem:[#allocation7 + $0x18] sm:$0xff]
    %v121 = vld [vmem:[#allocation7 + $0x20] sm:$0xff]
    %v122 = vld [vmem:[#allocation7 + $0x28] sm:$0xff]
    %v123 = vld [vmem:[#allocation7 + $0x30] sm:$0xff]
    %v124 = vld [vmem:[#allocation7 + $0x38] sm:$0xff]
    %v125 = vpack.c.bf16 %v117, %v117
    %v126 = vpack.c.bf16 %v118, %v118
    %v127 = vpack.c.bf16 %v119, %v119
    %v128 = vpack.c.bf16 %v120, %v120
    %v129 = vpack.c.bf16 %v121, %v121
    %v130 = vpack.c.bf16 %v122, %v122
    %v131 = vpack.c.bf16 %v123, %v123
    %v132 = vpack.c.bf16 %v124, %v124
    %vm133 = vcmask 64512
    %v135 = vsel %vm133, %v93, 0
    %v138 = vsel %vm133, %v109, 0
    %140 = vmatprep.subr.bf16.mxu0 0
    %141 = vmatpush1.bf16.xpose.msra.mxu0 %v138
    %142 = vmatprep.subr.bf16.mxu0 0
    %143 = vmatpush1.bf16.xpose.msra.mxu0 0
    %144 = vmatprep.subr.bf16.mxu0 0
    %145 = vmatpush1.bf16.xpose.msra.mxu0 0
    %146 = vmatprep.subr.bf16.mxu0 0
    %147 = vmatpush1.bf16.xpose.msra.mxu0 0
    %148 = vmatprep.subr.bf16.mxu0 0
    %149 = vmatpush1.bf16.xpose.msra.mxu0 0
    %150 = vmatprep.subr.bf16.mxu0 0
    %151 = vmatpush1.bf16.xpose.msra.mxu0 0
    %152 = vmatprep.subr.bf16.mxu0 0
    %153 = vmatpush1.bf16.xpose.msra.mxu0 0
    %154 = vmatprep.subr.bf16.mxu0 0
    %155 = vmatpush1.bf16.xpose.msra.mxu0 0
    %156 = vmatprep.subr.bf16.mxu0 0
    %157 = vmatpush1.bf16.xpose.msra.mxu0 0
    %158 = vmatprep.subr.bf16.mxu0 0
    %159 = vmatpush1.bf16.xpose.msra.mxu0 0
    %160 = vmatprep.subr.bf16.mxu0 0
    %161 = vmatpush1.bf16.xpose.msra.mxu0 0
    %162 = vmatprep.subr.bf16.mxu0 0
    %163 = vmatpush1.bf16.xpose.msra.mxu0 0
    %164 = vmatprep.subr.bf16.mxu0 0
    %165 = vmatpush1.bf16.xpose.msra.mxu0 0
    %166 = vmatprep.subr.bf16.mxu0 0
    %167 = vmatpush1.bf16.xpose.msra.mxu0 0
    %168 = vmatprep.subr.bf16.mxu0 0
    %169 = vmatpush1.bf16.xpose.msra.mxu0 0
    %170 = vmatprep.subr.bf16.mxu0 0
    %171 = vmatpush1.bf16.xpose.msra.mxu0 0
    %172 = vmatprep.mubr.bf16.mxu0 0
    %173 = vmatmul.mubr.bf16.gmra.mrb[0].mxu0 %v135
    %v174 = vpop.f32.mrb[0].mxu0
    %v175 = vadd.f32 0.0, %v174
    %v176 = vpop.f32.mrb[0].mxu0
    %v177 = vpop.f32.mrb[0].mxu0
    %v178 = vpop.f32.mrb[0].mxu0
    %179 = vdwg.mxu0
    %v181 = vsel %vm133, %v94, 0
    %v184 = vsel %vm133, %v110, 0
    %186 = vmatprep.subr.bf16.mxu0 0
    %187 = vmatpush1.bf16.xpose.msra.mxu0 %v184
    %188 = vmatprep.subr.bf16.mxu0 0
    %189 = vmatpush1.bf16.xpose.msra.mxu0 0
    %190 = vmatprep.subr.bf16.mxu0 0
    %191 = vmatpush1.bf16.xpose.msra.mxu0 0
    %192 = vmatprep.subr.bf16.mxu0 0
    %193 = vmatpush1.bf16.xpose.msra.mxu0 0
    %194 = vmatprep.subr.bf16.mxu0 0
    %195 = vmatpush1.bf16.xpose.msra.mxu0 0
    %196 = vmatprep.subr.bf16.mxu0 0
    %197 = vmatpush1.bf16.xpose.msra.mxu0 0
    %198 = vmatprep.subr.bf16.mxu0 0
    %199 = vmatpush1.bf16.xpose.msra.mxu0 0
    %200 = vmatprep.subr.bf16.mxu0 0
    %201 = vmatpush1.bf16.xpose.msra.mxu0 0
    %202 = vmatprep.subr.bf16.mxu0 0
    %203 = vmatpush1.bf16.xpose.msra.mxu0 0
    %204 = vmatprep.subr.bf16.mxu0 0
    %205 = vmatpush1.bf16.xpose.msra.mxu0 0
    %206 = vmatprep.subr.bf16.mxu0 0
    %207 = vmatpush1.bf16.xpose.msra.mxu0 0
    %208 = vmatprep.subr.bf16.mxu0 0
    %209 = vmatpush1.bf16.xpose.msra.mxu0 0
    %210 = vmatprep.subr.bf16.mxu0 0
    %211 = vmatpush1.bf16.xpose.msra.mxu0 0
    %212 = vmatprep.subr.bf16.mxu0 0
    %213 = vmatpush1.bf16.xpose.msra.mxu0 0
    %214 = vmatprep.subr.bf16.mxu0 0
    %215 = vmatpush1.bf16.xpose.msra.mxu0 0
    %216 = vmatprep.subr.bf16.mxu0 0
    %217 = vmatpush1.bf16.xpose.msra.mxu0 0
    %218 = vmatprep.mubr.bf16.mxu0 0
    %219 = vmatmul.mubr.bf16.gmra.mrb[0].mxu0 %v181
    %v220 = vpop.f32.mrb[0].mxu0
    %v221 = vadd.f32 0.0, %v220
    %v222 = vpop.f32.mrb[0].mxu0
    %v223 = vpop.f32.mrb[0].mxu0
    %v224 = vpop.f32.mrb[0].mxu0
    %225 = vdwg.mxu0
    %v227 = vsel %vm133, %v95, 0
    %v230 = vsel %vm133, %v111, 0
    %232 = vmatprep.subr.bf16.mxu0 0
    %233 = vmatpush1.bf16.xpose.msra.mxu0 %v230
    %234 = vmatprep.subr.bf16.mxu0 0
    %235 = vmatpush1.bf16.xpose.msra.mxu0 0
    %236 = vmatprep.subr.bf16.mxu0 0
    %237 = vmatpush1.bf16.xpose.msra.mxu0 0
    %238 = vmatprep.subr.bf16.mxu0 0
    %239 = vmatpush1.bf16.xpose.msra.mxu0 0
    %240 = vmatprep.subr.bf16.mxu0 0
    %241 = vmatpush1.bf16.xpose.msra.mxu0 0
    %242 = vmatprep.subr.bf16.mxu0 0
    %243 = vmatpush1.bf16.xpose.msra.mxu0 0
    %244 = vmatprep.subr.bf16.mxu0 0
    %245 = vmatpush1.bf16.xpose.msra.mxu0 0
    %246 = vmatprep.subr.bf16.mxu0 0
    %247 = vmatpush1.bf16.xpose.msra.mxu0 0
    %248 = vmatprep.subr.bf16.mxu0 0
    %249 = vmatpush1.bf16.xpose.msra.mxu0 0
    %250 = vmatprep.subr.bf16.mxu0 0
    %251 = vmatpush1.bf16.xpose.msra.mxu0 0
    %252 = vmatprep.subr.bf16.mxu0 0
    %253 = vmatpush1.bf16.xpose.msra.mxu0 0
    %254 = vmatprep.subr.bf16.mxu0 0
    %255 = vmatpush1.bf16.xpose.msra.mxu0 0
    %256 = vmatprep.subr.bf16.mxu0 0
    %257 = vmatpush1.bf16.xpose.msra.mxu0 0
    %258 = vmatprep.subr.bf16.mxu0 0
    %259 = vmatpush1.bf16.xpose.msra.mxu0 0
    %260 = vmatprep.subr.bf16.mxu0 0
    %261 = vmatpush1.bf16.xpose.msra.mxu0 0
    %262 = vmatprep.subr.bf16.mxu0 0
    %263 = vmatpush1.bf16.xpose.msra.mxu0 0
    %264 = vmatprep.mubr.bf16.mxu0 0
    %265 = vmatmul.mubr.bf16.gmra.mrb[0].mxu0 %v227
    %v266 = vpop.f32.mrb[0].mxu0
    %v267 = vadd.f32 0.0, %v266
    %v268 = vpop.f32.mrb[0].mxu0
    %v269 = vpop.f32.mrb[0].mxu0
    %v270 = vpop.f32.mrb[0].mxu0
    %271 = vdwg.mxu0
    %v273 = vsel %vm133, %v96, 0
    %v276 = vsel %vm133, %v112, 0
    %278 = vmatprep.subr.bf16.mxu0 0
    %279 = vmatpush1.bf16.xpose.msra.mxu0 %v276
    %280 = vmatprep.subr.bf16.mxu0 0
    %281 = vmatpush1.bf16.xpose.msra.mxu0 0
    %282 = vmatprep.subr.bf16.mxu0 0
    %283 = vmatpush1.bf16.xpose.msra.mxu0 0
    %284 = vmatprep.subr.bf16.mxu0 0
    %285 = vmatpush1.bf16.xpose.msra.mxu0 0
    %286 = vmatprep.subr.bf16.mxu0 0
    %287 = vmatpush1.bf16.xpose.msra.mxu0 0
    %288 = vmatprep.subr.bf16.mxu0 0
    %289 = vmatpush1.bf16.xpose.msra.mxu0 0
    %290 = vmatprep.subr.bf16.mxu0 0
    %291 = vmatpush1.bf16.xpose.msra.mxu0 0
    %292 = vmatprep.subr.bf16.mxu0 0
    %293 = vmatpush1.bf16.xpose.msra.mxu0 0
    %294 = vmatprep.subr.bf16.mxu0 0
    %295 = vmatpush1.bf16.xpose.msra.mxu0 0
    %296 = vmatprep.subr.bf16.mxu0 0
    %297 = vmatpush1.bf16.xpose.msra.mxu0 0
    %298 = vmatprep.subr.bf16.mxu0 0
    %299 = vmatpush1.bf16.xpose.msra.mxu0 0
    %300 = vmatprep.subr.bf16.mxu0 0
    %301 = vmatpush1.bf16.xpose.msra.mxu0 0
    %302 = vmatprep.subr.bf16.mxu0 0
    %303 = vmatpush1.bf16.xpose.msra.mxu0 0
    %304 = vmatprep.subr.bf16.mxu0 0
    %305 = vmatpush1.bf16.xpose.msra.mxu0 0
    %306 = vmatprep.subr.bf16.mxu0 0
    %307 = vmatpush1.bf16.xpose.msra.mxu0 0
    %308 = vmatprep.subr.bf16.mxu0 0
    %309 = vmatpush1.bf16.xpose.msra.mxu0 0
    %310 = vmatprep.mubr.bf16.mxu0 0
    %311 = vmatmul.mubr.bf16.gmra.mrb[0].mxu0 %v273
    %v312 = vpop.f32.mrb[0].mxu0
    %v313 = vadd.f32 0.0, %v312
    %v314 = vpop.f32.mrb[0].mxu0
    %v315 = vpop.f32.mrb[0].mxu0
    %v316 = vpop.f32.mrb[0].mxu0
    %317 = vdwg.mxu0
    %v319 = vsel %vm133, %v97, 0
    %v322 = vsel %vm133, %v113, 0
    %324 = vmatprep.subr.bf16.mxu0 0
    %325 = vmatpush1.bf16.xpose.msra.mxu0 %v322
    %326 = vmatprep.subr.bf16.mxu0 0
    %327 = vmatpush1.bf16.xpose.msra.mxu0 0
    %328 = vmatprep.subr.bf16.mxu0 0
    %329 = vmatpush1.bf16.xpose.msra.mxu0 0
    %330 = vmatprep.subr.bf16.mxu0 0
    %331 = vmatpush1.bf16.xpose.msra.mxu0 0
    %332 = vmatprep.subr.bf16.mxu0 0
    %333 = vmatpush1.bf16.xpose.msra.mxu0 0
    %334 = vmatprep.subr.bf16.mxu0 0
    %335 = vmatpush1.bf16.xpose.msra.mxu0 0
    %336 = vmatprep.subr.bf16.mxu0 0
    %337 = vmatpush1.bf16.xpose.msra.mxu0 0
    %338 = vmatprep.subr.bf16.mxu0 0
    %339 = vmatpush1.bf16.xpose.msra.mxu0 0
    %340 = vmatprep.subr.bf16.mxu0 0
    %341 = vmatpush1.bf16.xpose.msra.mxu0 0
    %342 = vmatprep.subr.bf16.mxu0 0
    %343 = vmatpush1.bf16.xpose.msra.mxu0 0
    %344 = vmatprep.subr.bf16.mxu0 0
    %345 = vmatpush1.bf16.xpose.msra.mxu0 0
    %346 = vmatprep.subr.bf16.mxu0 0
    %347 = vmatpush1.bf16.xpose.msra.mxu0 0
    %348 = vmatprep.subr.bf16.mxu0 0
    %349 = vmatpush1.bf16.xpose.msra.mxu0 0
    %350 = vmatprep.subr.bf16.mxu0 0
    %351 = vmatpush1.bf16.xpose.msra.mxu0 0
    %352 = vmatprep.subr.bf16.mxu0 0
    %353 = vmatpush1.bf16.xpose.msra.mxu0 0
    %354 = vmatprep.subr.bf16.mxu0 0
    %355 = vmatpush1.bf16.xpose.msra.mxu0 0
    %356 = vmatprep.mubr.bf16.mxu0 0
    %357 = vmatmul.mubr.bf16.gmra.mrb[0].mxu0 %v319
    %v358 = vpop.f32.mrb[0].mxu0
    %v359 = vadd.f32 0.0, %v358
    %v360 = vpop.f32.mrb[0].mxu0
    %v361 = vpop.f32.mrb[0].mxu0
    %v362 = vpop.f32.mrb[0].mxu0
    %363 = vdwg.mxu0
    %v365 = vsel %vm133, %v98, 0
    %v368 = vsel %vm133, %v114, 0
    %370 = vmatprep.subr.bf16.mxu0 0
    %371 = vmatpush1.bf16.xpose.msra.mxu0 %v368
    %372 = vmatprep.subr.bf16.mxu0 0
    %373 = vmatpush1.bf16.xpose.msra.mxu0 0
    %374 = vmatprep.subr.bf16.mxu0 0
    %375 = vmatpush1.bf16.xpose.msra.mxu0 0
    %376 = vmatprep.subr.bf16.mxu0 0
    %377 = vmatpush1.bf16.xpose.msra.mxu0 0
    %378 = vmatprep.subr.bf16.mxu0 0
    %379 = vmatpush1.bf16.xpose.msra.mxu0 0
    %380 = vmatprep.subr.bf16.mxu0 0
    %381 = vmatpush1.bf16.xpose.msra.mxu0 0
    %382 = vmatprep.subr.bf16.mxu0 0
    %383 = vmatpush1.bf16.xpose.msra.mxu0 0
    %384 = vmatprep.subr.bf16.mxu0 0
    %385 = vmatpush1.bf16.xpose.msra.mxu0 0
    %386 = vmatprep.subr.bf16.mxu0 0
    %387 = vmatpush1.bf16.xpose.msra.mxu0 0
    %388 = vmatprep.subr.bf16.mxu0 0
    %389 = vmatpush1.bf16.xpose.msra.mxu0 0
    %390 = vmatprep.subr.bf16.mxu0 0
    %391 = vmatpush1.bf16.xpose.msra.mxu0 0
    %392 = vmatprep.subr.bf16.mxu0 0
    %393 = vmatpush1.bf16.xpose.msra.mxu0 0
    %394 = vmatprep.subr.bf16.mxu0 0
    %395 = vmatpush1.bf16.xpose.msra.mxu0 0
    %396 = vmatprep.subr.bf16.mxu0 0
    %397 = vmatpush1.bf16.xpose.msra.mxu0 0
    %398 = vmatprep.subr.bf16.mxu0 0
    %399 = vmatpush1.bf16.xpose.msra.mxu0 0
    %400 = vmatprep.subr.bf16.mxu0 0
    %401 = vmatpush1.bf16.xpose.msra.mxu0 0
    %402 = vmatprep.mubr.bf16.mxu0 0
    %403 = vmatmul.mubr.bf16.gmra.mrb[0].mxu0 %v365
    %v404 = vpop.f32.mrb[0].mxu0
    %v405 = vadd.f32 0.0, %v404
    %v406 = vpop.f32.mrb[0].mxu0
    %v407 = vpop.f32.mrb[0].mxu0
    %v408 = vpop.f32.mrb[0].mxu0
    %409 = vdwg.mxu0
    %v411 = vsel %vm133, %v99, 0
    %v414 = vsel %vm133, %v115, 0
    %416 = vmatprep.subr.bf16.mxu0 0
    %417 = vmatpush1.bf16.xpose.msra.mxu0 %v414
    %418 = vmatprep.subr.bf16.mxu0 0
    %419 = vmatpush1.bf16.xpose.msra.mxu0 0
    %420 = vmatprep.subr.bf16.mxu0 0
    %421 = vmatpush1.bf16.xpose.msra.mxu0 0
    %422 = vmatprep.subr.bf16.mxu0 0
    %423 = vmatpush1.bf16.xpose.msra.mxu0 0
    %424 = vmatprep.subr.bf16.mxu0 0
    %425 = vmatpush1.bf16.xpose.msra.mxu0 0
    %426 = vmatprep.subr.bf16.mxu0 0
    %427 = vmatpush1.bf16.xpose.msra.mxu0 0
    %428 = vmatprep.subr.bf16.mxu0 0
    %429 = vmatpush1.bf16.xpose.msra.mxu0 0
    %430 = vmatprep.subr.bf16.mxu0 0
    %431 = vmatpush1.bf16.xpose.msra.mxu0 0
    %432 = vmatprep.subr.bf16.mxu0 0
    %433 = vmatpush1.bf16.xpose.msra.mxu0 0
    %434 = vmatprep.subr.bf16.mxu0 0
    %435 = vmatpush1.bf16.xpose.msra.mxu0 0
    %436 = vmatprep.subr.bf16.mxu0 0
    %437 = vmatpush1.bf16.xpose.msra.mxu0 0
    %438 = vmatprep.subr.bf16.mxu0 0
    %439 = vmatpush1.bf16.xpose.msra.mxu0 0
    %440 = vmatprep.subr.bf16.mxu0 0
    %441 = vmatpush1.bf16.xpose.msra.mxu0 0
    %442 = vmatprep.subr.bf16.mxu0 0
    %443 = vmatpush1.bf16.xpose.msra.mxu0 0
    %444 = vmatprep.subr.bf16.mxu0 0
    %445 = vmatpush1.bf16.xpose.msra.mxu0 0
    %446 = vmatprep.subr.bf16.mxu0 0
    %447 = vmatpush1.bf16.xpose.msra.mxu0 0
    %448 = vmatprep.mubr.bf16.mxu0 0
    %449 = vmatmul.mubr.bf16.gmra.mrb[0].mxu0 %v411
    %v450 = vpop.f32.mrb[0].mxu0
    %v451 = vadd.f32 0.0, %v450
    %v452 = vpop.f32.mrb[0].mxu0
    %v453 = vpop.f32.mrb[0].mxu0
    %v454 = vpop.f32.mrb[0].mxu0
    %455 = vdwg.mxu0
    %v457 = vsel %vm133, %v100, 0
    %v460 = vsel %vm133, %v116, 0
    %462 = vmatprep.subr.bf16.mxu0 0
    %463 = vmatpush1.bf16.xpose.msra.mxu0 %v460
    %464 = vmatprep.subr.bf16.mxu0 0
    %465 = vmatpush1.bf16.xpose.msra.mxu0 0
    %466 = vmatprep.subr.bf16.mxu0 0
    %467 = vmatpush1.bf16.xpose.msra.mxu0 0
    %468 = vmatprep.subr.bf16.mxu0 0
    %469 = vmatpush1.bf16.xpose.msra.mxu0 0
    %470 = vmatprep.subr.bf16.mxu0 0
    %471 = vmatpush1.bf16.xpose.msra.mxu0 0
    %472 = vmatprep.subr.bf16.mxu0 0
    %473 = vmatpush1.bf16.xpose.msra.mxu0 0
    %474 = vmatprep.subr.bf16.mxu0 0
    %475 = vmatpush1.bf16.xpose.msra.mxu0 0
    %476 = vmatprep.subr.bf16.mxu0 0
    %477 = vmatpush1.bf16.xpose.msra.mxu0 0
    %478 = vmatprep.subr.bf16.mxu0 0
    %479 = vmatpush1.bf16.xpose.msra.mxu0 0
    %480 = vmatprep.subr.bf16.mxu0 0
    %481 = vmatpush1.bf16.xpose.msra.mxu0 0
    %482 = vmatprep.subr.bf16.mxu0 0
    %483 = vmatpush1.bf16.xpose.msra.mxu0 0
    %484 = vmatprep.subr.bf16.mxu0 0
    %485 = vmatpush1.bf16.xpose.msra.mxu0 0
    %486 = vmatprep.subr.bf16.mxu0 0
    %487 = vmatpush1.bf16.xpose.msra.mxu0 0
    %488 = vmatprep.subr.bf16.mxu0 0
    %489 = vmatpush1.bf16.xpose.msra.mxu0 0
    %490 = vmatprep.subr.bf16.mxu0 0
    %491 = vmatpush1.bf16.xpose.msra.mxu0 0
    %492 = vmatprep.subr.bf16.mxu0 0
    %493 = vmatpush1.bf16.xpose.msra.mxu0 0
    %494 = vmatprep.mubr.bf16.mxu0 0
    %495 = vmatmul.mubr.bf16.gmra.mrb[0].mxu0 %v457
    %v496 = vpop.f32.mrb[0].mxu0
    %v497 = vadd.f32 0.0, %v496
    %v498 = vpop.f32.mrb[0].mxu0
    %v499 = vpop.f32.mrb[0].mxu0
    %v500 = vpop.f32.mrb[0].mxu0
    %501 = vdwg.mxu0
    %v502 = vsel %vm133, %v175, -inf
    %503 = vmax.xlane.f32.xlu0 %v502
    %v504 = vpop.xlane.xlu0 %503
    %v505 = vsel %vm133, %v221, -inf
    %506 = vmax.xlane.f32.xlu0 %v505
    %v507 = vpop.xlane.xlu0 %506
    %v508 = vsel %vm133, %v267, -inf
    %509 = vmax.xlane.f32.xlu0 %v508
    %v510 = vpop.xlane.xlu0 %509
    %v511 = vsel %vm133, %v313, -inf
    %512 = vmax.xlane.f32.xlu0 %v511
    %v513 = vpop.xlane.xlu0 %512
    %v514 = vsel %vm133, %v359, -inf
    %515 = vmax.xlane.f32.xlu0 %v514
    %v516 = vpop.xlane.xlu0 %515
    %v517 = vsel %vm133, %v405, -inf
    %518 = vmax.xlane.f32.xlu0 %v517
    %v519 = vpop.xlane.xlu0 %518
    %v520 = vsel %vm133, %v451, -inf
    %521 = vmax.xlane.f32.xlu0 %v520
    %v522 = vpop.xlane.xlu0 %521
    %v523 = vsel %vm133, %v497, -inf
    %524 = vmax.xlane.f32.xlu0 %v523
    %v525 = vpop.xlane.xlu0 %524
    %v526 = vsub.f32 %v175, %v504
    %v527 = vsub.f32 %v221, %v507
    %v528 = vsub.f32 %v267, %v510
    %v529 = vsub.f32 %v313, %v513
    %v530 = vsub.f32 %v359, %v516
    %v531 = vsub.f32 %v405, %v519
    %v532 = vsub.f32 %v451, %v522
    %v533 = vsub.f32 %v497, %v525
    %v534 = vmul.f32 %v526, 1.442695
    %v535 = vpow.pop %v534
    %v536 = vmul.f32 %v527, 1.442695
    %v537 = vpow.pop %v536
    %v538 = vmul.f32 %v528, 1.442695
    %v539 = vpow.pop %v538
    %v540 = vmul.f32 %v529, 1.442695
    %v541 = vpow.pop %v540
    %v542 = vmul.f32 %v530, 1.442695
    %v543 = vpow.pop %v542
    %v544 = vmul.f32 %v531, 1.442695
    %v545 = vpow.pop %v544
    %v546 = vmul.f32 %v532, 1.442695
    %v547 = vpow.pop %v546
    %v548 = vmul.f32 %v533, 1.442695
    %v549 = vpow.pop %v548
    %v550 = vsel %vm133, %v535, 0.0
    %551 = vadd.xlane.f32.xlu0 %v550
    %v552 = vpop.xlane.xlu0 %551
    %v553 = vsel %vm133, %v537, 0.0
    %554 = vadd.xlane.f32.xlu0 %v553
    %v555 = vpop.xlane.xlu0 %554
    %v556 = vsel %vm133, %v539, 0.0
    %557 = vadd.xlane.f32.xlu0 %v556
    %v558 = vpop.xlane.xlu0 %557
    %v559 = vsel %vm133, %v541, 0.0
    %560 = vadd.xlane.f32.xlu0 %v559
    %v561 = vpop.xlane.xlu0 %560
    %v562 = vsel %vm133, %v543, 0.0
    %563 = vadd.xlane.f32.xlu0 %v562
    %v564 = vpop.xlane.xlu0 %563
    %v565 = vsel %vm133, %v545, 0.0
    %566 = vadd.xlane.f32.xlu0 %v565
    %v567 = vpop.xlane.xlu0 %566
    %v568 = vsel %vm133, %v547, 0.0
    %569 = vadd.xlane.f32.xlu0 %v568
    %v570 = vpop.xlane.xlu0 %569
    %v571 = vsel %vm133, %v549, 0.0
    %572 = vadd.xlane.f32.xlu0 %v571
    %v573 = vpop.xlane.xlu0 %572
    %v574 = vrcp.pop %v552
    %v575 = vrcp.pop %v555
    %v576 = vrcp.pop %v558
    %v577 = vrcp.pop %v561
    %v578 = vrcp.pop %v564
    %v579 = vrcp.pop %v567
    %v580 = vrcp.pop %v570
    %v581 = vrcp.pop %v573
    %v582 = vpack.c.bf16 %v535, %v535
    %v583 = vpack.c.bf16 %v537, %v537
    %v584 = vpack.c.bf16 %v539, %v539
    %v585 = vpack.c.bf16 %v541, %v541
    %v586 = vpack.c.bf16 %v543, %v543
    %v587 = vpack.c.bf16 %v545, %v545
    %v588 = vpack.c.bf16 %v547, %v547
    %v589 = vpack.c.bf16 %v549, %v549
    %v591 = vsel %vm133, %v582, 0
    %vm593 = vcmask 1043456
    %v595 = vsel %vm593, %v125, 0
    %597 = vmatprep.subr.bf16.mxu0 0
    %598 = vmatpush1.bf16.msra.mxu0 %v595
    %599 = vmatprep.subr.bf16.mxu0 0
    %600 = vmatpush1.bf16.msra.mxu0 0
    %601 = vmatprep.subr.bf16.mxu0 0
    %602 = vmatpush1.bf16.msra.mxu0 0
    %603 = vmatprep.subr.bf16.mxu0 0
    %604 = vmatpush1.bf16.msra.mxu0 0
    %605 = vmatprep.subr.bf16.mxu0 0
    %606 = vmatpush1.bf16.msra.mxu0 0
    %607 = vmatprep.subr.bf16.mxu0 0
    %608 = vmatpush1.bf16.msra.mxu0 0
    %609 = vmatprep.subr.bf16.mxu0 0
    %610 = vmatpush1.bf16.msra.mxu0 0
    %611 = vmatprep.subr.bf16.mxu0 0
    %612 = vmatpush1.bf16.msra.mxu0 0
    %613 = vmatprep.subr.bf16.mxu0 0
    %614 = vmatpush1.bf16.msra.mxu0 0
    %615 = vmatprep.subr.bf16.mxu0 0
    %616 = vmatpush1.bf16.msra.mxu0 0
    %617 = vmatprep.subr.bf16.mxu0 0
    %618 = vmatpush1.bf16.msra.mxu0 0
    %619 = vmatprep.subr.bf16.mxu0 0
    %620 = vmatpush1.bf16.msra.mxu0 0
    %621 = vmatprep.subr.bf16.mxu0 0
    %622 = vmatpush1.bf16.msra.mxu0 0
    %623 = vmatprep.subr.bf16.mxu0 0
    %624 = vmatpush1.bf16.msra.mxu0 0
    %625 = vmatprep.subr.bf16.mxu0 0
    %626 = vmatpush1.bf16.msra.mxu0 0
    %627 = vmatprep.subr.bf16.mxu0 0
    %628 = vmatpush1.bf16.msra.mxu0 0
    %629 = vmatprep.mubr.bf16.mxu0 0
    %630 = vmatmul.mubr.bf16.gmra.mrb[0].mxu0 %v591
    %v631 = vpop.f32.mrb[0].mxu0
    %v632 = vadd.f32 0.0, %v631
    %v633 = vpop.f32.mrb[0].mxu0
    %v634 = vpop.f32.mrb[0].mxu0
    %v635 = vpop.f32.mrb[0].mxu0
    %636 = vdwg.mxu0
    %v638 = vsel %vm133, %v583, 0
    %v641 = vsel %vm593, %v126, 0
    %643 = vmatprep.subr.bf16.mxu0 0
    %644 = vmatpush1.bf16.msra.mxu0 %v641
    %645 = vmatprep.subr.bf16.mxu0 0
    %646 = vmatpush1.bf16.msra.mxu0 0
    %647 = vmatprep.subr.bf16.mxu0 0
    %648 = vmatpush1.bf16.msra.mxu0 0
    %649 = vmatprep.subr.bf16.mxu0 0
    %650 = vmatpush1.bf16.msra.mxu0 0
    %651 = vmatprep.subr.bf16.mxu0 0
    %652 = vmatpush1.bf16.msra.mxu0 0
    %653 = vmatprep.subr.bf16.mxu0 0
    %654 = vmatpush1.bf16.msra.mxu0 0
    %655 = vmatprep.subr.bf16.mxu0 0
    %656 = vmatpush1.bf16.msra.mxu0 0
    %657 = vmatprep.subr.bf16.mxu0 0
    %658 = vmatpush1.bf16.msra.mxu0 0
    %659 = vmatprep.subr.bf16.mxu0 0
    %660 = vmatpush1.bf16.msra.mxu0 0
    %661 = vmatprep.subr.bf16.mxu0 0
    %662 = vmatpush1.bf16.msra.mxu0 0
    %663 = vmatprep.subr.bf16.mxu0 0
    %664 = vmatpush1.bf16.msra.mxu0 0
    %665 = vmatprep.subr.bf16.mxu0 0
    %666 = vmatpush1.bf16.msra.mxu0 0
    %667 = vmatprep.subr.bf16.mxu0 0
    %668 = vmatpush1.bf16.msra.mxu0 0
    %669 = vmatprep.subr.bf16.mxu0 0
    %670 = vmatpush1.bf16.msra.mxu0 0
    %671 = vmatprep.subr.bf16.mxu0 0
    %672 = vmatpush1.bf16.msra.mxu0 0
    %673 = vmatprep.subr.bf16.mxu0 0
    %674 = vmatpush1.bf16.msra.mxu0 0
    %675 = vmatprep.mubr.bf16.mxu0 0
    %676 = vmatmul.mubr.bf16.gmra.mrb[0].mxu0 %v638
    %v677 = vpop.f32.mrb[0].mxu0
    %v678 = vadd.f32 0.0, %v677
    %v679 = vpop.f32.mrb[0].mxu0
    %v680 = vpop.f32.mrb[0].mxu0
    %v681 = vpop.f32.mrb[0].mxu0
    %682 = vdwg.mxu0
    %v684 = vsel %vm133, %v584, 0
    %v687 = vsel %vm593, %v127, 0
    %689 = vmatprep.subr.bf16.mxu0 0
    %690 = vmatpush1.bf16.msra.mxu0 %v687
    %691 = vmatprep.subr.bf16.mxu0 0
    %692 = vmatpush1.bf16.msra.mxu0 0
    %693 = vmatprep.subr.bf16.mxu0 0
    %694 = vmatpush1.bf16.msra.mxu0 0
    %695 = vmatprep.subr.bf16.mxu0 0
    %696 = vmatpush1.bf16.msra.mxu0 0
    %697 = vmatprep.subr.bf16.mxu0 0
    %698 = vmatpush1.bf16.msra.mxu0 0
    %699 = vmatprep.subr.bf16.mxu0 0
    %700 = vmatpush1.bf16.msra.mxu0 0
    %701 = vmatprep.subr.bf16.mxu0 0
    %702 = vmatpush1.bf16.msra.mxu0 0
    %703 = vmatprep.subr.bf16.mxu0 0
    %704 = vmatpush1.bf16.msra.mxu0 0
    %705 = vmatprep.subr.bf16.mxu0 0
    %706 = vmatpush1.bf16.msra.mxu0 0
    %707 = vmatprep.subr.bf16.mxu0 0
    %708 = vmatpush1.bf16.msra.mxu0 0
    %709 = vmatprep.subr.bf16.mxu0 0
    %710 = vmatpush1.bf16.msra.mxu0 0
    %711 = vmatprep.subr.bf16.mxu0 0
    %712 = vmatpush1.bf16.msra.mxu0 0
    %713 = vmatprep.subr.bf16.mxu0 0
    %714 = vmatpush1.bf16.msra.mxu0 0
    %715 = vmatprep.subr.bf16.mxu0 0
    %716 = vmatpush1.bf16.msra.mxu0 0
    %717 = vmatprep.subr.bf16.mxu0 0
    %718 = vmatpush1.bf16.msra.mxu0 0
    %719 = vmatprep.subr.bf16.mxu0 0
    %720 = vmatpush1.bf16.msra.mxu0 0
    %721 = vmatprep.mubr.bf16.mxu0 0
    %722 = vmatmul.mubr.bf16.gmra.mrb[0].mxu0 %v684
    %v723 = vpop.f32.mrb[0].mxu0
    %v724 = vadd.f32 0.0, %v723
    %v725 = vpop.f32.mrb[0].mxu0
    %v726 = vpop.f32.mrb[0].mxu0
    %v727 = vpop.f32.mrb[0].mxu0
    %728 = vdwg.mxu0
    %v730 = vsel %vm133, %v585, 0
    %v733 = vsel %vm593, %v128, 0
    %735 = vmatprep.subr.bf16.mxu0 0
    %736 = vmatpush1.bf16.msra.mxu0 %v733
    %737 = vmatprep.subr.bf16.mxu0 0
    %738 = vmatpush1.bf16.msra.mxu0 0
    %739 = vmatprep.subr.bf16.mxu0 0
    %740 = vmatpush1.bf16.msra.mxu0 0
    %741 = vmatprep.subr.bf16.mxu0 0
    %742 = vmatpush1.bf16.msra.mxu0 0
    %743 = vmatprep.subr.bf16.mxu0 0
    %744 = vmatpush1.bf16.msra.mxu0 0
    %745 = vmatprep.subr.bf16.mxu0 0
    %746 = vmatpush1.bf16.msra.mxu0 0
    %747 = vmatprep.subr.bf16.mxu0 0
    %748 = vmatpush1.bf16.msra.mxu0 0
    %749 = vmatprep.subr.bf16.mxu0 0
    %750 = vmatpush1.bf16.msra.mxu0 0
    %751 = vmatprep.subr.bf16.mxu0 0
    %752 = vmatpush1.bf16.msra.mxu0 0
    %753 = vmatprep.subr.bf16.mxu0 0
    %754 = vmatpush1.bf16.msra.mxu0 0
    %755 = vmatprep.subr.bf16.mxu0 0
    %756 = vmatpush1.bf16.msra.mxu0 0
    %757 = vmatprep.subr.bf16.mxu0 0
    %758 = vmatpush1.bf16.msra.mxu0 0
    %759 = vmatprep.subr.bf16.mxu0 0
    %760 = vmatpush1.bf16.msra.mxu0 0
    %761 = vmatprep.subr.bf16.mxu0 0
    %762 = vmatpush1.bf16.msra.mxu0 0
    %763 = vmatprep.subr.bf16.mxu0 0
    %764 = vmatpush1.bf16.msra.mxu0 0
    %765 = vmatprep.subr.bf16.mxu0 0
    %766 = vmatpush1.bf16.msra.mxu0 0
    %767 = vmatprep.mubr.bf16.mxu0 0
    %768 = vmatmul.mubr.bf16.gmra.mrb[0].mxu0 %v730
    %v769 = vpop.f32.mrb[0].mxu0
    %v770 = vadd.f32 0.0, %v769
    %v771 = vpop.f32.mrb[0].mxu0
    %v772 = vpop.f32.mrb[0].mxu0
    %v773 = vpop.f32.mrb[0].mxu0
    %774 = vdwg.mxu0
    %v776 = vsel %vm133, %v586, 0
    %v779 = vsel %vm593, %v129, 0
    %781 = vmatprep.subr.bf16.mxu0 0
    %782 = vmatpush1.bf16.msra.mxu0 %v779
    %783 = vmatprep.subr.bf16.mxu0 0
    %784 = vmatpush1.bf16.msra.mxu0 0
    %785 = vmatprep.subr.bf16.mxu0 0
    %786 = vmatpush1.bf16.msra.mxu0 0
    %787 = vmatprep.subr.bf16.mxu0 0
    %788 = vmatpush1.bf16.msra.mxu0 0
    %789 = vmatprep.subr.bf16.mxu0 0
    %790 = vmatpush1.bf16.msra.mxu0 0
    %791 = vmatprep.subr.bf16.mxu0 0
    %792 = vmatpush1.bf16.msra.mxu0 0
    %793 = vmatprep.subr.bf16.mxu0 0
    %794 = vmatpush1.bf16.msra.mxu0 0
    %795 = vmatprep.subr.bf16.mxu0 0
    %796 = vmatpush1.bf16.msra.mxu0 0
    %797 = vmatprep.subr.bf16.mxu0 0
    %798 = vmatpush1.bf16.msra.mxu0 0
    %799 = vmatprep.subr.bf16.mxu0 0
    %800 = vmatpush1.bf16.msra.mxu0 0
    %801 = vmatprep.subr.bf16.mxu0 0
    %802 = vmatpush1.bf16.msra.mxu0 0
    %803 = vmatprep.subr.bf16.mxu0 0
    %804 = vmatpush1.bf16.msra.mxu0 0
    %805 = vmatprep.subr.bf16.mxu0 0
    %806 = vmatpush1.bf16.msra.mxu0 0
    %807 = vmatprep.subr.bf16.mxu0 0
    %808 = vmatpush1.bf16.msra.mxu0 0
    %809 = vmatprep.subr.bf16.mxu0 0
    %810 = vmatpush1.bf16.msra.mxu0 0
    %811 = vmatprep.subr.bf16.mxu0 0
    %812 = vmatpush1.bf16.msra.mxu0 0
    %813 = vmatprep.mubr.bf16.mxu0 0
    %814 = vmatmul.mubr.bf16.gmra.mrb[0].mxu0 %v776
    %v815 = vpop.f32.mrb[0].mxu0
    %v816 = vadd.f32 0.0, %v815
    %v817 = vpop.f32.mrb[0].mxu0
    %v818 = vpop.f32.mrb[0].mxu0
    %v819 = vpop.f32.mrb[0].mxu0
    %820 = vdwg.mxu0
    %v822 = vsel %vm133, %v587, 0
    %v825 = vsel %vm593, %v130, 0
    %827 = vmatprep.subr.bf16.mxu0 0
    %828 = vmatpush1.bf16.msra.mxu0 %v825
    %829 = vmatprep.subr.bf16.mxu0 0
    %830 = vmatpush1.bf16.msra.mxu0 0
    %831 = vmatprep.subr.bf16.mxu0 0
    %832 = vmatpush1.bf16.msra.mxu0 0
    %833 = vmatprep.subr.bf16.mxu0 0
    %834 = vmatpush1.bf16.msra.mxu0 0
    %835 = vmatprep.subr.bf16.mxu0 0
    %836 = vmatpush1.bf16.msra.mxu0 0
    %837 = vmatprep.subr.bf16.mxu0 0
    %838 = vmatpush1.bf16.msra.mxu0 0
    %839 = vmatprep.subr.bf16.mxu0 0
    %840 = vmatpush1.bf16.msra.mxu0 0
    %841 = vmatprep.subr.bf16.mxu0 0
    %842 = vmatpush1.bf16.msra.mxu0 0
    %843 = vmatprep.subr.bf16.mxu0 0
    %844 = vmatpush1.bf16.msra.mxu0 0
    %845 = vmatprep.subr.bf16.mxu0 0
    %846 = vmatpush1.bf16.msra.mxu0 0
    %847 = vmatprep.subr.bf16.mxu0 0
    %848 = vmatpush1.bf16.msra.mxu0 0
    %849 = vmatprep.subr.bf16.mxu0 0
    %850 = vmatpush1.bf16.msra.mxu0 0
    %851 = vmatprep.subr.bf16.mxu0 0
    %852 = vmatpush1.bf16.msra.mxu0 0
    %853 = vmatprep.subr.bf16.mxu0 0
    %854 = vmatpush1.bf16.msra.mxu0 0
    %855 = vmatprep.subr.bf16.mxu0 0
    %856 = vmatpush1.bf16.msra.mxu0 0
    %857 = vmatprep.subr.bf16.mxu0 0
    %858 = vmatpush1.bf16.msra.mxu0 0
    %859 = vmatprep.mubr.bf16.mxu0 0
    %860 = vmatmul.mubr.bf16.gmra.mrb[0].mxu0 %v822
    %v861 = vpop.f32.mrb[0].mxu0
    %v862 = vadd.f32 0.0, %v861
    %v863 = vpop.f32.mrb[0].mxu0
    %v864 = vpop.f32.mrb[0].mxu0
    %v865 = vpop.f32.mrb[0].mxu0
    %866 = vdwg.mxu0
    %v868 = vsel %vm133, %v588, 0
    %v871 = vsel %vm593, %v131, 0
    %873 = vmatprep.subr.bf16.mxu0 0
    %874 = vmatpush1.bf16.msra.mxu0 %v871
    %875 = vmatprep.subr.bf16.mxu0 0
    %876 = vmatpush1.bf16.msra.mxu0 0
    %877 = vmatprep.subr.bf16.mxu0 0
    %878 = vmatpush1.bf16.msra.mxu0 0
    %879 = vmatprep.subr.bf16.mxu0 0
    %880 = vmatpush1.bf16.msra.mxu0 0
    %881 = vmatprep.subr.bf16.mxu0 0
    %882 = vmatpush1.bf16.msra.mxu0 0
    %883 = vmatprep.subr.bf16.mxu0 0
    %884 = vmatpush1.bf16.msra.mxu0 0
    %885 = vmatprep.subr.bf16.mxu0 0
    %886 = vmatpush1.bf16.msra.mxu0 0
    %887 = vmatprep.subr.bf16.mxu0 0
    %888 = vmatpush1.bf16.msra.mxu0 0
    %889 = vmatprep.subr.bf16.mxu0 0
    %890 = vmatpush1.bf16.msra.mxu0 0
    %891 = vmatprep.subr.bf16.mxu0 0
    %892 = vmatpush1.bf16.msra.mxu0 0
    %893 = vmatprep.subr.bf16.mxu0 0
    %894 = vmatpush1.bf16.msra.mxu0 0
    %895 = vmatprep.subr.bf16.mxu0 0
    %896 = vmatpush1.bf16.msra.mxu0 0
    %897 = vmatprep.subr.bf16.mxu0 0
    %898 = vmatpush1.bf16.msra.mxu0 0
    %899 = vmatprep.subr.bf16.mxu0 0
    %900 = vmatpush1.bf16.msra.mxu0 0
    %901 = vmatprep.subr.bf16.mxu0 0
    %902 = vmatpush1.bf16.msra.mxu0 0
    %903 = vmatprep.subr.bf16.mxu0 0
    %904 = vmatpush1.bf16.msra.mxu0 0
    %905 = vmatprep.mubr.bf16.mxu0 0
    %906 = vmatmul.mubr.bf16.gmra.mrb[0].mxu0 %v868
    %v907 = vpop.f32.mrb[0].mxu0
    %v908 = vadd.f32 0.0, %v907
    %v909 = vpop.f32.mrb[0].mxu0
    %v910 = vpop.f32.mrb[0].mxu0
    %v911 = vpop.f32.mrb[0].mxu0
    %912 = vdwg.mxu0
    %v914 = vsel %vm133, %v589, 0
    %v917 = vsel %vm593, %v132, 0
    %919 = vmatprep.subr.bf16.mxu0 0
    %920 = vmatpush1.bf16.msra.mxu0 %v917
    %921 = vmatprep.subr.bf16.mxu0 0
    %922 = vmatpush1.bf16.msra.mxu0 0
    %923 = vmatprep.subr.bf16.mxu0 0
    %924 = vmatpush1.bf16.msra.mxu0 0
    %925 = vmatprep.subr.bf16.mxu0 0
    %926 = vmatpush1.bf16.msra.mxu0 0
    %927 = vmatprep.subr.bf16.mxu0 0
    %928 = vmatpush1.bf16.msra.mxu0 0
    %929 = vmatprep.subr.bf16.mxu0 0
    %930 = vmatpush1.bf16.msra.mxu0 0
    %931 = vmatprep.subr.bf16.mxu0 0
    %932 = vmatpush1.bf16.msra.mxu0 0
    %933 = vmatprep.subr.bf16.mxu0 0
    %934 = vmatpush1.bf16.msra.mxu0 0
    %935 = vmatprep.subr.bf16.mxu0 0
    %936 = vmatpush1.bf16.msra.mxu0 0
    %937 = vmatprep.subr.bf16.mxu0 0
    %938 = vmatpush1.bf16.msra.mxu0 0
    %939 = vmatprep.subr.bf16.mxu0 0
    %940 = vmatpush1.bf16.msra.mxu0 0
    %941 = vmatprep.subr.bf16.mxu0 0
    %942 = vmatpush1.bf16.msra.mxu0 0
    %943 = vmatprep.subr.bf16.mxu0 0
    %944 = vmatpush1.bf16.msra.mxu0 0
    %945 = vmatprep.subr.bf16.mxu0 0
    %946 = vmatpush1.bf16.msra.mxu0 0
    %947 = vmatprep.subr.bf16.mxu0 0
    %948 = vmatpush1.bf16.msra.mxu0 0
    %949 = vmatprep.subr.bf16.mxu0 0
    %950 = vmatpush1.bf16.msra.mxu0 0
    %951 = vmatprep.mubr.bf16.mxu0 0
    %952 = vmatmul.mubr.bf16.gmra.mrb[0].mxu0 %v914
    %v953 = vpop.f32.mrb[0].mxu0
    %v954 = vadd.f32 0.0, %v953
    %v955 = vpop.f32.mrb[0].mxu0
    %v956 = vpop.f32.mrb[0].mxu0
    %v957 = vpop.f32.mrb[0].mxu0
    %958 = vdwg.mxu0
    %v959 = vmul.f32 %v632, %v574
    %v960 = vmul.f32 %v678, %v575
    %v961 = vmul.f32 %v724, %v576
    %v962 = vmul.f32 %v770, %v577
    %v963 = vmul.f32 %v816, %v578
    %v964 = vmul.f32 %v862, %v579
    %v965 = vmul.f32 %v908, %v580
    %v966 = vmul.f32 %v954, %v581
    %v967 = vpack.c.bf16 %v959, %v959
    %v968 = vpack.c.bf16 %v960, %v960
    %v969 = vpack.c.bf16 %v961, %v961
    %v970 = vpack.c.bf16 %v962, %v962
    %v971 = vpack.c.bf16 %v963, %v963
    %v972 = vpack.c.bf16 %v964, %v964
    %v973 = vpack.c.bf16 %v965, %v965
    %v974 = vpack.c.bf16 %v966, %v966
    %v975 = vld [vmem:[#allocation8] sm:$0xf]
    %v976 = vld [vmem:[#allocation8 + $0x4] sm:$0xf]
    %v977 = vld [vmem:[#allocation8 + $0x8] sm:$0xf]
    %v978 = vld [vmem:[#allocation8 + $0xc] sm:$0xf]
    %v980 = vsel %vm133, %v967, 0
    %v983 = vsel %vm593, %v975, 0
    %985 = vmatprep.subr.bf16.mxu0 0
    %986 = vmatpush1.bf16.msra.mxu0 %v983
    %987 = vmatprep.subr.bf16.mxu0 0
    %988 = vmatpush1.bf16.msra.mxu0 0
    %989 = vmatprep.subr.bf16.mxu0 0
    %990 = vmatpush1.bf16.msra.mxu0 0
    %991 = vmatprep.subr.bf16.mxu0 0
    %992 = vmatpush1.bf16.msra.mxu0 0
    %993 = vmatprep.subr.bf16.mxu0 0
    %994 = vmatpush1.bf16.msra.mxu0 0
    %995 = vmatprep.subr.bf16.mxu0 0
    %996 = vmatpush1.bf16.msra.mxu0 0
    %997 = vmatprep.subr.bf16.mxu0 0
    %998 = vmatpush1.bf16.msra.mxu0 0
    %999 = vmatprep.subr.bf16.mxu0 0
    %1000 = vmatpush1.bf16.msra.mxu0 0
    %1001 = vmatprep.subr.bf16.mxu0 0
    %1002 = vmatpush1.bf16.msra.mxu0 0
    %1003 = vmatprep.subr.bf16.mxu0 0
    %1004 = vmatpush1.bf16.msra.mxu0 0
    %1005 = vmatprep.subr.bf16.mxu0 0
    %1006 = vmatpush1.bf16.msra.mxu0 0
    %1007 = vmatprep.subr.bf16.mxu0 0
    %1008 = vmatpush1.bf16.msra.mxu0 0
    %1009 = vmatprep.subr.bf16.mxu0 0
    %1010 = vmatpush1.bf16.msra.mxu0 0
    %1011 = vmatprep.subr.bf16.mxu0 0
    %1012 = vmatpush1.bf16.msra.mxu0 0
    %1013 = vmatprep.subr.bf16.mxu0 0
    %1014 = vmatpush1.bf16.msra.mxu0 0
    %1015 = vmatprep.subr.bf16.mxu0 0
    %1016 = vmatpush1.bf16.msra.mxu0 0
    %1017 = vmatprep.mubr.bf16.mxu0 0
    %1018 = vmatmul.mubr.bf16.gmra.mrb[0].mxu0 %v980
    %v1019 = vpop.f32.mrb[0].mxu0
    %v1020 = vadd.f32 0.0, %v1019
    %v1021 = vpop.f32.mrb[0].mxu0
    %v1022 = vpop.f32.mrb[0].mxu0
    %v1023 = vpop.f32.mrb[0].mxu0
    %1024 = vdwg.mxu0
    %v1026 = vsel %vm133, %v968, 0
    %v1029 = vsel %vm593, %v976, 0
    %1031 = vmatprep.subr.bf16.mxu0 0
    %1032 = vmatpush1.bf16.msra.mxu0 %v1029
    %1033 = vmatprep.subr.bf16.mxu0 0
    %1034 = vmatpush1.bf16.msra.mxu0 0
    %1035 = vmatprep.subr.bf16.mxu0 0
    %1036 = vmatpush1.bf16.msra.mxu0 0
    %1037 = vmatprep.subr.bf16.mxu0 0
    %1038 = vmatpush1.bf16.msra.mxu0 0
    %1039 = vmatprep.subr.bf16.mxu0 0
    %1040 = vmatpush1.bf16.msra.mxu0 0
    %1041 = vmatprep.subr.bf16.mxu0 0
    %1042 = vmatpush1.bf16.msra.mxu0 0
    %1043 = vmatprep.subr.bf16.mxu0 0
    %1044 = vmatpush1.bf16.msra.mxu0 0
    %1045 = vmatprep.subr.bf16.mxu0 0
    %1046 = vmatpush1.bf16.msra.mxu0 0
    %1047 = vmatprep.subr.bf16.mxu0 0
    %1048 = vmatpush1.bf16.msra.mxu0 0
    %1049 = vmatprep.subr.bf16.mxu0 0
    %1050 = vmatpush1.bf16.msra.mxu0 0
    %1051 = vmatprep.subr.bf16.mxu0 0
    %1052 = vmatpush1.bf16.msra.mxu0 0
    %1053 = vmatprep.subr.bf16.mxu0 0
    %1054 = vmatpush1.bf16.msra.mxu0 0
    %1055 = vmatprep.subr.bf16.mxu0 0
    %1056 = vmatpush1.bf16.msra.mxu0 0
    %1057 = vmatprep.subr.bf16.mxu0 0
    %1058 = vmatpush1.bf16.msra.mxu0 0
    %1059 = vmatprep.subr.bf16.mxu0 0
    %1060 = vmatpush1.bf16.msra.mxu0 0
    %1061 = vmatprep.subr.bf16.mxu0 0
    %1062 = vmatpush1.bf16.msra.mxu0 0
    %1063 = vmatprep.mubr.bf16.mxu0 0
    %1064 = vmatmul.mubr.bf16.gmra.mrb[0].mxu0 %v1026
    %v1065 = vpop.f32.mrb[0].mxu0
    %v1066 = vadd.f32 0.0, %v1065
    %v1067 = vpop.f32.mrb[0].mxu0
    %v1068 = vpop.f32.mrb[0].mxu0
    %v1069 = vpop.f32.mrb[0].mxu0
    %1070 = vdwg.mxu0
    %v1072 = vsel %vm133, %v969, 0
    %v1075 = vsel %vm593, %v977, 0
    %1077 = vmatprep.subr.bf16.mxu0 0
    %1078 = vmatpush1.bf16.msra.mxu0 %v1075
    %1079 = vmatprep.subr.bf16.mxu0 0
    %1080 = vmatpush1.bf16.msra.mxu0 0
    %1081 = vmatprep.subr.bf16.mxu0 0
    %1082 = vmatpush1.bf16.msra.mxu0 0
    %1083 = vmatprep.subr.bf16.mxu0 0
    %1084 = vmatpush1.bf16.msra.mxu0 0
    %1085 = vmatprep.subr.bf16.mxu0 0
    %1086 = vmatpush1.bf16.msra.mxu0 0
    %1087 = vmatprep.subr.bf16.mxu0 0
    %1088 = vmatpush1.bf16.msra.mxu0 0
    %1089 = vmatprep.subr.bf16.mxu0 0
    %1090 = vmatpush1.bf16.msra.mxu0 0
    %1091 = vmatprep.subr.bf16.mxu0 0
    %1092 = vmatpush1.bf16.msra.mxu0 0
    %1093 = vmatprep.subr.bf16.mxu0 0
    %1094 = vmatpush1.bf16.msra.mxu0 0
    %1095 = vmatprep.subr.bf16.mxu0 0
    %1096 = vmatpush1.bf16.msra.mxu0 0
    %1097 = vmatprep.subr.bf16.mxu0 0
    %1098 = vmatpush1.bf16.msra.mxu0 0
    %1099 = vmatprep.subr.bf16.mxu0 0
    %1100 = vmatpush1.bf16.msra.mxu0 0
    %1101 = vmatprep.subr.bf16.mxu0 0
    %1102 = vmatpush1.bf16.msra.mxu0 0
    %1103 = vmatprep.subr.bf16.mxu0 0
    %1104 = vmatpush1.bf16.msra.mxu0 0
    %1105 = vmatprep.subr.bf16.mxu0 0
    %1106 = vmatpush1.bf16.msra.mxu0 0
    %1107 = vmatprep.subr.bf16.mxu0 0
    %1108 = vmatpush1.bf16.msra.mxu0 0
    %1109 = vmatprep.mubr.bf16.mxu0 0
    %1110 = vmatmul.mubr.bf16.gmra.mrb[0].mxu0 %v1072
    %v1111 = vpop.f32.mrb[0].mxu0
    %v1112 = vadd.f32 0.0, %v1111
    %v1113 = vpop.f32.mrb[0].mxu0
    %v1114 = vpop.f32.mrb[0].mxu0
    %v1115 = vpop.f32.mrb[0].mxu0
    %1116 = vdwg.mxu0
    %v1118 = vsel %vm133, %v970, 0
    %v1121 = vsel %vm593, %v978, 0
    %1123 = vmatprep.subr.bf16.mxu0 0
    %1124 = vmatpush1.bf16.msra.mxu0 %v1121
    %1125 = vmatprep.subr.bf16.mxu0 0
    %1126 = vmatpush1.bf16.msra.mxu0 0
    %1127 = vmatprep.subr.bf16.mxu0 0
    %1128 = vmatpush1.bf16.msra.mxu0 0
    %1129 = vmatprep.subr.bf16.mxu0 0
    %1130 = vmatpush1.bf16.msra.mxu0 0
    %1131 = vmatprep.subr.bf16.mxu0 0
    %1132 = vmatpush1.bf16.msra.mxu0 0
    %1133 = vmatprep.subr.bf16.mxu0 0
    %1134 = vmatpush1.bf16.msra.mxu0 0
    %1135 = vmatprep.subr.bf16.mxu0 0
    %1136 = vmatpush1.bf16.msra.mxu0 0
    %1137 = vmatprep.subr.bf16.mxu0 0
    %1138 = vmatpush1.bf16.msra.mxu0 0
    %1139 = vmatprep.subr.bf16.mxu0 0
    %1140 = vmatpush1.bf16.msra.mxu0 0
    %1141 = vmatprep.subr.bf16.mxu0 0
    %1142 = vmatpush1.bf16.msra.mxu0 0
    %1143 = vmatprep.subr.bf16.mxu0 0
    %1144 = vmatpush1.bf16.msra.mxu0 0
    %1145 = vmatprep.subr.bf16.mxu0 0
    %1146 = vmatpush1.bf16.msra.mxu0 0
    %1147 = vmatprep.subr.bf16.mxu0 0
    %1148 = vmatpush1.bf16.msra.mxu0 0
    %1149 = vmatprep.subr.bf16.mxu0 0
    %1150 = vmatpush1.bf16.msra.mxu0 0
    %1151 = vmatprep.subr.bf16.mxu0 0
    %1152 = vmatpush1.bf16.msra.mxu0 0
    %1153 = vmatprep.subr.bf16.mxu0 0
    %1154 = vmatpush1.bf16.msra.mxu0 0
    %1155 = vmatprep.mubr.bf16.mxu0 0
    %1156 = vmatmul.mubr.bf16.gmra.mrb[0].mxu0 %v1118
    %v1157 = vpop.f32.mrb[0].mxu0
    %v1158 = vadd.f32 0.0, %v1157
    %v1159 = vpop.f32.mrb[0].mxu0
    %v1160 = vpop.f32.mrb[0].mxu0
    %v1161 = vpop.f32.mrb[0].mxu0
    %1162 = vdwg.mxu0
    %v1164 = vsel %vm133, %v971, 0
    %1166 = vmatprep.subr.bf16.mxu0 0
    %1167 = vmatpush1.bf16.msra.mxu0 %v983
    %1168 = vmatprep.subr.bf16.mxu0 0
    %1169 = vmatpush1.bf16.msra.mxu0 0
    %1170 = vmatprep.subr.bf16.mxu0 0
    %1171 = vmatpush1.bf16.msra.mxu0 0
    %1172 = vmatprep.subr.bf16.mxu0 0
    %1173 = vmatpush1.bf16.msra.mxu0 0
    %1174 = vmatprep.subr.bf16.mxu0 0
    %1175 = vmatpush1.bf16.msra.mxu0 0
    %1176 = vmatprep.subr.bf16.mxu0 0
    %1177 = vmatpush1.bf16.msra.mxu0 0
    %1178 = vmatprep.subr.bf16.mxu0 0
    %1179 = vmatpush1.bf16.msra.mxu0 0
    %1180 = vmatprep.subr.bf16.mxu0 0
    %1181 = vmatpush1.bf16.msra.mxu0 0
    %1182 = vmatprep.subr.bf16.mxu0 0
    %1183 = vmatpush1.bf16.msra.mxu0 0
    %1184 = vmatprep.subr.bf16.mxu0 0
    %1185 = vmatpush1.bf16.msra.mxu0 0
    %1186 = vmatprep.subr.bf16.mxu0 0
    %1187 = vmatpush1.bf16.msra.mxu0 0
    %1188 = vmatprep.subr.bf16.mxu0 0
    %1189 = vmatpush1.bf16.msra.mxu0 0
    %1190 = vmatprep.subr.bf16.mxu0 0
    %1191 = vmatpush1.bf16.msra.mxu0 0
    %1192 = vmatprep.subr.bf16.mxu0 0
    %1193 = vmatpush1.bf16.msra.mxu0 0
    %1194 = vmatprep.subr.bf16.mxu0 0
    %1195 = vmatpush1.bf16.msra.mxu0 0
    %1196 = vmatprep.subr.bf16.mxu0 0
    %1197 = vmatpush1.bf16.msra.mxu0 0
    %1198 = vmatprep.mubr.bf16.mxu0 0
    %1199 = vmatmul.mubr.bf16.gmra.mrb[0].mxu0 %v1164
    %v1200 = vpop.f32.mrb[0].mxu0
    %v1201 = vadd.f32 0.0, %v1200
    %v1202 = vpop.f32.mrb[0].mxu0
    %v1203 = vpop.f32.mrb[0].mxu0
    %v1204 = vpop.f32.mrb[0].mxu0
    %1205 = vdwg.mxu0
    %v1207 = vsel %vm133, %v972, 0
    %1209 = vmatprep.subr.bf16.mxu0 0
    %1210 = vmatpush1.bf16.msra.mxu0 %v1029
    %1211 = vmatprep.subr.bf16.mxu0 0
    %1212 = vmatpush1.bf16.msra.mxu0 0
    %1213 = vmatprep.subr.bf16.mxu0 0
    %1214 = vmatpush1.bf16.msra.mxu0 0
    %1215 = vmatprep.subr.bf16.mxu0 0
    %1216 = vmatpush1.bf16.msra.mxu0 0
    %1217 = vmatprep.subr.bf16.mxu0 0
    %1218 = vmatpush1.bf16.msra.mxu0 0
    %1219 = vmatprep.subr.bf16.mxu0 0
    %1220 = vmatpush1.bf16.msra.mxu0 0
    %1221 = vmatprep.subr.bf16.mxu0 0
    %1222 = vmatpush1.bf16.msra.mxu0 0
    %1223 = vmatprep.subr.bf16.mxu0 0
    %1224 = vmatpush1.bf16.msra.mxu0 0
    %1225 = vmatprep.subr.bf16.mxu0 0
    %1226 = vmatpush1.bf16.msra.mxu0 0
    %1227 = vmatprep.subr.bf16.mxu0 0
    %1228 = vmatpush1.bf16.msra.mxu0 0
    %1229 = vmatprep.subr.bf16.mxu0 0
    %1230 = vmatpush1.bf16.msra.mxu0 0
    %1231 = vmatprep.subr.bf16.mxu0 0
    %1232 = vmatpush1.bf16.msra.mxu0 0
    %1233 = vmatprep.subr.bf16.mxu0 0
    %1234 = vmatpush1.bf16.msra.mxu0 0
    %1235 = vmatprep.subr.bf16.mxu0 0
    %1236 = vmatpush1.bf16.msra.mxu0 0
    %1237 = vmatprep.subr.bf16.mxu0 0
    %1238 = vmatpush1.bf16.msra.mxu0 0
    %1239 = vmatprep.subr.bf16.mxu0 0
    %1240 = vmatpush1.bf16.msra.mxu0 0
    %1241 = vmatprep.mubr.bf16.mxu0 0
    %1242 = vmatmul.mubr.bf16.gmra.mrb[0].mxu0 %v1207
    %v1243 = vpop.f32.mrb[0].mxu0
    %v1244 = vadd.f32 0.0, %v1243
    %v1245 = vpop.f32.mrb[0].mxu0
    %v1246 = vpop.f32.mrb[0].mxu0
    %v1247 = vpop.f32.mrb[0].mxu0
    %1248 = vdwg.mxu0
    %v1250 = vsel %vm133, %v973, 0
    %1252 = vmatprep.subr.bf16.mxu0 0
    %1253 = vmatpush1.bf16.msra.mxu0 %v1075
    %1254 = vmatprep.subr.bf16.mxu0 0
    %1255 = vmatpush1.bf16.msra.mxu0 0
    %1256 = vmatprep.subr.bf16.mxu0 0
    %1257 = vmatpush1.bf16.msra.mxu0 0
    %1258 = vmatprep.subr.bf16.mxu0 0
    %1259 = vmatpush1.bf16.msra.mxu0 0
    %1260 = vmatprep.subr.bf16.mxu0 0
    %1261 = vmatpush1.bf16.msra.mxu0 0
    %1262 = vmatprep.subr.bf16.mxu0 0
    %1263 = vmatpush1.bf16.msra.mxu0 0
    %1264 = vmatprep.subr.bf16.mxu0 0
    %1265 = vmatpush1.bf16.msra.mxu0 0
    %1266 = vmatprep.subr.bf16.mxu0 0
    %1267 = vmatpush1.bf16.msra.mxu0 0
    %1268 = vmatprep.subr.bf16.mxu0 0
    %1269 = vmatpush1.bf16.msra.mxu0 0
    %1270 = vmatprep.subr.bf16.mxu0 0
    %1271 = vmatpush1.bf16.msra.mxu0 0
    %1272 = vmatprep.subr.bf16.mxu0 0
    %1273 = vmatpush1.bf16.msra.mxu0 0
    %1274 = vmatprep.subr.bf16.mxu0 0
    %1275 = vmatpush1.bf16.msra.mxu0 0
    %1276 = vmatprep.subr.bf16.mxu0 0
    %1277 = vmatpush1.bf16.msra.mxu0 0
    %1278 = vmatprep.subr.bf16.mxu0 0
    %1279 = vmatpush1.bf16.msra.mxu0 0
    %1280 = vmatprep.subr.bf16.mxu0 0
    %1281 = vmatpush1.bf16.msra.mxu0 0
    %1282 = vmatprep.subr.bf16.mxu0 0
    %1283 = vmatpush1.bf16.msra.mxu0 0
    %1284 = vmatprep.mubr.bf16.mxu0 0
    %1285 = vmatmul.mubr.bf16.gmra.mrb[0].mxu0 %v1250
    %v1286 = vpop.f32.mrb[0].mxu0
    %v1287 = vadd.f32 0.0, %v1286
    %v1288 = vpop.f32.mrb[0].mxu0
    %v1289 = vpop.f32.mrb[0].mxu0
    %v1290 = vpop.f32.mrb[0].mxu0
    %1291 = vdwg.mxu0
    %v1293 = vsel %vm133, %v974, 0
    %1295 = vmatprep.subr.bf16.mxu0 0
    %1296 = vmatpush1.bf16.msra.mxu0 %v1121
    %1297 = vmatprep.subr.bf16.mxu0 0
    %1298 = vmatpush1.bf16.msra.mxu0 0
    %1299 = vmatprep.subr.bf16.mxu0 0
    %1300 = vmatpush1.bf16.msra.mxu0 0
    %1301 = vmatprep.subr.bf16.mxu0 0
    %1302 = vmatpush1.bf16.msra.mxu0 0
    %1303 = vmatprep.subr.bf16.mxu0 0
    %1304 = vmatpush1.bf16.msra.mxu0 0
    %1305 = vmatprep.subr.bf16.mxu0 0
    %1306 = vmatpush1.bf16.msra.mxu0 0
    %1307 = vmatprep.subr.bf16.mxu0 0
    %1308 = vmatpush1.bf16.msra.mxu0 0
    %1309 = vmatprep.subr.bf16.mxu0 0
    %1310 = vmatpush1.bf16.msra.mxu0 0
    %1311 = vmatprep.subr.bf16.mxu0 0
    %1312 = vmatpush1.bf16.msra.mxu0 0
    %1313 = vmatprep.subr.bf16.mxu0 0
    %1314 = vmatpush1.bf16.msra.mxu0 0
    %1315 = vmatprep.subr.bf16.mxu0 0
    %1316 = vmatpush1.bf16.msra.mxu0 0
    %1317 = vmatprep.subr.bf16.mxu0 0
    %1318 = vmatpush1.bf16.msra.mxu0 0
    %1319 = vmatprep.subr.bf16.mxu0 0
    %1320 = vmatpush1.bf16.msra.mxu0 0
    %1321 = vmatprep.subr.bf16.mxu0 0
    %1322 = vmatpush1.bf16.msra.mxu0 0
    %1323 = vmatprep.subr.bf16.mxu0 0
    %1324 = vmatpush1.bf16.msra.mxu0 0
    %1325 = vmatprep.subr.bf16.mxu0 0
    %1326 = vmatpush1.bf16.msra.mxu0 0
    %1327 = vmatprep.mubr.bf16.mxu0 0
    %1328 = vmatmul.mubr.bf16.gmra.mrb[0].mxu0 %v1293
    %v1329 = vpop.f32.mrb[0].mxu0
    %v1330 = vadd.f32 0.0, %v1329
    %v1331 = vpop.f32.mrb[0].mxu0
    %v1332 = vpop.f32.mrb[0].mxu0
    %v1333 = vpop.f32.mrb[0].mxu0
    %1334 = vdwg.mxu0
    %v1335 = vadd.f32 %v1020, %v1066
    %v1336 = vadd.f32 %v1335, %v1112
    %v1337 = vadd.f32 %v1336, %v1158
    %v1338 = vadd.f32 %v1201, %v1244
    %v1339 = vadd.f32 %v1338, %v1287
    %v1340 = vadd.f32 %v1339, %v1330
    %v1341 = vld [vmem:[%s4] sm:$0x1]
    %v1343 = vlaneseq
    %v1344 = vshrl.u32 %v1343, 7
    %v1345 = vsub.s32 0, %v1344
    %v1346 = vrot.slane %v1341, %v1345
    %v1348 = vadd.f32 %v1337, %v1346
    %v1349 = vadd.f32 %v1340, %v1346
    %1350 = vst [vmem:[#allocation10] sm:$0xff] %v1348
    %1351 = vst [vmem:[#allocation10 + $0x8] sm:$0xff] %v1349
    // Predicated region
    $region38: #{tpu_custom_call.1} parent=1 // pred_check
      _
    $region39: #{tpu_custom_call.1} parent=1 // pred_check_branch
      %1353 = sbr.rel (0) target = $region41
    $region40: #{tpu_custom_call.1} parent=1 // pred_region
      %s1355 = ssub.s32 256, 256
      %1356 = vsyncadd [#allocation4], %s1355
      %s1357 = sshll.u32 [#allocation10], 4
      %s1358 = int_to_ptr.vmem [resolvable:$true] %s1357
      %1363 = dma.vmem_to_hbm [thread:$0]  %s1358, 256, %s5, [#allocation4], 128, 128, 8
    $region41: #{tpu_custom_call.1} parent=1 // pred_fallthru
      _
    // Predicated region
    $region42: #{tpu_custom_call.1} parent=1 // pred_check
      _
    $region43: #{tpu_custom_call.1} parent=1 // pred_check_branch
      %1365 = sbr.rel (0) target = $region45
    $region44: #{tpu_custom_call.1} parent=1 // pred_region
      %1366 = dma.done [#allocation4], 256
    $region45: #{tpu_custom_call.1} parent=1 // pred_fallthru
      _
    %1367 = vsyncpa [#allocation3], 1
    %1368 = vsyncpa [#allocation6], 1
    %1369 = vsyncpa [#allocation9], 1
    %1370 = vsyncpa [#allocation4], 1

</llo_original>
